<compile_context>
chip_gen: v7x
topology: tpu7x:2x2x1
jax: 0.10.0
libtpu: 0.0.40
codegen_flags: <defaults>
</compile_context>

<pallas_src>
import numpy as np
import jax
import jax.numpy as jnp
from jax import lax
from jax.experimental import pallas as pl
from jax.experimental.pallas import tpu as pltpu

_LANE = 128
_TILE_TARGET = 8192  # lanes per spatial tile (sweepable; ~2-3 MB VMEM at N=8, fits v7x)


def _round_up(x, m):
    return (x + m - 1) // m * m


def _make_kernel(emit_loss):
    def kernel(pred_ref, gt_ref, mask_ref, vneg_ref, stats_ref, *rest):
        pred = pred_ref[...]      # (N, T) f32 in (0,1)
        gt = gt_ref[...]          # (N, T) f32, binary {0,1}
        mask = mask_ref[...]      # (N, T) f32, binary {0,1}

        # F.binary_cross_entropy(pred, gt, reduction='none'):
        #   -(y*log(x) + (1-y)*log(1-x)), log terms clamped at -100.
        log_p = jnp.maximum(jnp.log(pred), -100.0)
        log_1mp = jnp.maximum(jnp.log(1.0 - pred), -100.0)
        loss = -(gt * log_p + (1.0 - gt) * log_1mp)          # (N, T)

        # Rank-1 factorization of the PyTorch (N,1,H,W)*(N,H,W)->(N,N,H,W) broadcast:
        #   negative_loss[i,j,t] = (loss[i,t]*(1-gt[i,t])) * mask[j,t]
        # With binary gt/mask the .byte() truncation is the identity, so only the
        # (N,T) value map and per-column multiplicities are needed downstream.
        vneg_ref[...] = loss * (1.0 - gt)

        n_batch = float(pred.shape[0])
        mcol = jnp.sum(mask, axis=0, keepdims=True)           # (1,T): sum_j mask[j,t]
        gcol = jnp.sum(gt, axis=0, keepdims=True)             # (1,T): sum_i gt[i,t]
        plcol = jnp.sum(loss * gt, axis=0, keepdims=True)     # (1,T): sum_i loss*gt

        stats = jnp.concatenate(
            [mcol,                         # row 0: mask multiplicity per column
             gcol * mcol,                  # row 1: positive count per column
             (n_batch - gcol) * mcol,      # row 2: negative count per column
             plcol * mcol],                # row 3: positive loss per column
            axis=0)                        # (4, T)
        stats_ref[...] = stats

        if emit_loss:
            rest[0][...] = loss            # per-element BCE map for return_origin
    return kernel


def balance_cross_entropy_loss(pred, gt, mask, negative_ratio=3.0, eps=1e-6,
                               return_origin=False):
    """pred: (N,1,H,W) f32 in (0,1); gt: (N,1,H,W) binary; mask: (N,H,W) binary."""
    N, C, H, W = pred.shape
    assert C == 1
    HW = H * W
    pred2 = pred.reshape(N, HW).astype(jnp.float32)
    gt2 = gt.reshape(N, HW).astype(jnp.float32)
    mask2 = mask.reshape(N, HW).astype(jnp.float32)

    # Near-even spatial tiling into lane-multiple tiles of <= _TILE_TARGET lanes.
    num_tiles = max(1, -(-HW // _TILE_TARGET))
    tile = _round_up(-(-HW // num_tiles), _LANE)
    hw_pad = tile * num_tiles
    pad = hw_pad - HW
    if pad:
        # pred padded with 0.5 (finite log); gt/mask padded with 0 so padded columns
        # have zero multiplicity and contribute nothing to counts, sums or the top-k.
        pred2 = jnp.pad(pred2, ((0, 0), (0, pad)), constant_values=0.5)
        gt2 = jnp.pad(gt2, ((0, 0), (0, pad)))
        mask2 = jnp.pad(mask2, ((0, 0), (0, pad)))

    row_spec = pl.BlockSpec((N, tile), lambda t: (0, t))
    out_shapes = [jax.ShapeDtypeStruct((N, hw_pad), jnp.float32),
                  jax.ShapeDtypeStruct((4, hw_pad), jnp.float32)]
    out_specs = [row_spec, pl.BlockSpec((4, tile), lambda t: (0, t))]
    if return_origin:
        out_shapes.append(jax.ShapeDtypeStruct((N, hw_pad), jnp.float32))
        out_specs.append(row_spec)

    outs = pl.pallas_call(
        _make_kernel(return_origin),
        out_shape=tuple(out_shapes),
        grid_spec=pltpu.PrefetchScalarGridSpec(
            num_scalar_prefetch=0,
            grid=(num_tiles,),
            in_specs=[row_spec, row_spec, row_spec],
            out_specs=tuple(out_specs)),
        compiler_params=pltpu.CompilerParams(
            dimension_semantics=("parallel",)),
    )(pred2, gt2, mask2)

    v_neg, stats = outs[0], outs[1]

    mcol = stats[0]                                            # (hw_pad,)
    # Exact integer counts: per-column values are small exact integers in f32.
    positive_count = jnp.sum(stats[1].astype(jnp.int32))
    negative_total = jnp.sum(stats[2].astype(jnp.int32))
    positive_loss_sum = jnp.sum(stats[3])

    negative_cap = jnp.floor(
        positive_count.astype(jnp.float32) * negative_ratio).astype(jnp.int32)
    negative_count = jnp.minimum(negative_total, negative_cap)

    # Weighted top-k over the N*HW unique negative-loss values, each carrying
    # multiplicity mcol[t] (the number of mask rows replicating it in the PyTorch
    # (N,N,H,W) broadcast).  Exact: descending key/value sort + int32 prefix weights.
    # TODO(synk): torch.topk with data-dependent k has no clean in-kernel Pallas
    # equivalent; done as a sort_key_val + prefix-scan in plain JAX.
    v_flat = v_neg.reshape(-1)
    w_flat = jnp.broadcast_to(mcol[None, :], v_neg.shape).reshape(-1)
    neg_keys, w_sorted = lax.sort_key_val(-v_flat, w_flat)
    v_sorted = -neg_keys
    w_i = w_sorted.astype(jnp.int32)
    cw = jnp.cumsum(w_i)
    take = jnp.clip(negative_count - (cw - w_i), 0, w_i).astype(jnp.float32)
    negative_topk_sum = jnp.sum(v_sorted * take)

    denom = (positive_count + negative_count).astype(jnp.float32) + eps
    balance_loss = (positive_loss_sum + negative_topk_sum) / denom

    if return_origin:
        loss_full = outs[2][:, :HW].reshape(N, 1, H, W)
        return balance_loss, loss_full
    return balance_loss, None


def _reference(pred, gt, mask, negative_ratio=3.0, eps=1e-6):
    pred = np.asarray(pred, np.float64)
    gt = np.asarray(gt, np.float64)
    mask = np.asarray(mask, np.float64)
    positive = (gt * mask).astype(np.uint8)          # (N,1,H,W)*(N,H,W) -> (N,N,H,W)
    negative = ((1.0 - gt) * mask).astype(np.uint8)
    positive_count = int(positive.astype(np.float64).sum())
    negative_count = min(int(negative.astype(np.float64).sum()),
                         int(positive_count * negative_ratio))
    loss = -(gt * np.maximum(np.log(pred), -100.0) +
             (1.0 - gt) * np.maximum(np.log(1.0 - pred), -100.0))
    positive_loss = loss * positive.astype(np.float64)
    negative_loss = (loss * negative.astype(np.float64)).reshape(-1)
    negative_loss = np.sort(negative_loss)[::-1][:negative_count]
    bal = (positive_loss.sum() + negative_loss.sum()) / (
        positive_count + negative_count + eps)
    return bal, loss


if __name__ == "__main__":
    N, H, W = 2, 24, 20   # HW=480 -> padded to 512 lanes: exercises the padding path
    key = jax.random.PRNGKey(0)
    k1, k2, k3 = jax.random.split(key, 3)
    pred = jax.nn.sigmoid(jax.random.normal(k1, (N, 1, H, W), jnp.float32))
    gt = jax.random.bernoulli(k2, 0.3, (N, 1, H, W)).astype(jnp.float32)
    mask = jax.random.bernoulli(k3, 0.7, (N, H, W)).astype(jnp.float32)

    ref_bal, ref_loss = _reference(pred, gt, mask)

    balance_loss, loss_map = balance_cross_entropy_loss(pred, gt, mask,
                                                        return_origin=True)
    balance_loss = jax.block_until_ready(balance_loss)
    np.testing.assert_allclose(float(balance_loss), float(ref_bal),
                               rtol=1e-4, atol=1e-5)
    np.testing.assert_allclose(np.asarray(loss_map),
                               ref_loss.reshape(N, 1, H, W),
                               rtol=1e-4, atol=1e-5)

    balance_loss2, _ = balance_cross_entropy_loss(pred, gt, mask)
    balance_loss2 = jax.block_until_ready(balance_loss2)
    np.testing.assert_allclose(float(balance_loss2), float(ref_bal),
                               rtol=1e-4, atol=1e-5)

    print("KERNEL_OK")
</pallas_src>

<mosaic_0001>
module attributes {stable_mosaic.version = 11 : i64} {
  func.func @kernel(%arg0: i32, %arg1: memref<2x512xf32, #tpu.memory_space<vmem>>, %arg2: memref<2x512xf32, #tpu.memory_space<vmem>>, %arg3: memref<2x512xf32, #tpu.memory_space<vmem>>, %arg4: memref<2x512xf32, #tpu.memory_space<vmem>>, %arg5: memref<4x512xf32, #tpu.memory_space<vmem>>, %arg6: memref<2x512xf32, #tpu.memory_space<vmem>>) attributes {dimension_semantics = [#tpu.dimension_semantics<parallel>], iteration_bounds = array<i64: 1>, scalar_prefetch = 0 : i64, scratch_operands = 0 : i64, tpu.core_type = #tpu.core_type<tc>, window_params = [{transform_indices = @transform_0, window_bounds = array<i64: 2, 512>}, {transform_indices = @transform_1, window_bounds = array<i64: 2, 512>}, {transform_indices = @transform_2, window_bounds = array<i64: 2, 512>}, {transform_indices = @transform_3, window_bounds = array<i64: 2, 512>}, {transform_indices = @transform_4, window_bounds = array<i64: 4, 512>}, {transform_indices = @transform_5, window_bounds = array<i64: 2, 512>}]} {
    %c0 = arith.constant 0 : index
    %c0_0 = arith.constant 0 : index
    %0 = vector.load %arg1[%c0, %c0_0] : memref<2x512xf32, #tpu.memory_space<vmem>>, vector<2x512xf32>
    %c0_1 = arith.constant 0 : index
    %c0_2 = arith.constant 0 : index
    %1 = vector.load %arg2[%c0_1, %c0_2] : memref<2x512xf32, #tpu.memory_space<vmem>>, vector<2x512xf32>
    %c0_3 = arith.constant 0 : index
    %c0_4 = arith.constant 0 : index
    %2 = vector.load %arg3[%c0_3, %c0_4] : memref<2x512xf32, #tpu.memory_space<vmem>>, vector<2x512xf32>
    %3 = math.log %0 : vector<2x512xf32>
    %cst = arith.constant -1.000000e+02 : f32
    %4 = vector.broadcast %cst : f32 to vector<2x512xf32>
    %5 = arith.maximumf %3, %4 : vector<2x512xf32>
    %cst_5 = arith.constant 1.000000e+00 : f32
    %6 = vector.broadcast %cst_5 : f32 to vector<2x512xf32>
    %7 = arith.subf %6, %0 : vector<2x512xf32>
    %8 = math.log %7 : vector<2x512xf32>
    %cst_6 = arith.constant -1.000000e+02 : f32
    %9 = vector.broadcast %cst_6 : f32 to vector<2x512xf32>
    %10 = arith.maximumf %8, %9 : vector<2x512xf32>
    %11 = arith.mulf %1, %5 : vector<2x512xf32>
    %cst_7 = arith.constant 1.000000e+00 : f32
    %12 = vector.broadcast %cst_7 : f32 to vector<2x512xf32>
    %13 = arith.subf %12, %1 : vector<2x512xf32>
    %14 = arith.mulf %13, %10 : vector<2x512xf32>
    %15 = arith.addf %11, %14 : vector<2x512xf32>
    %cst_8 = arith.constant 0.000000e+00 : f32
    %16 = vector.broadcast %cst_8 : f32 to vector<2x512xf32>
    %17 = arith.subf %16, %15 : vector<2x512xf32>
    %cst_9 = arith.constant 1.000000e+00 : f32
    %18 = vector.broadcast %cst_9 : f32 to vector<2x512xf32>
    %19 = arith.subf %18, %1 : vector<2x512xf32>
    %20 = arith.mulf %17, %19 : vector<2x512xf32>
    %c0_10 = arith.constant 0 : index
    %c0_11 = arith.constant 0 : index
    %21 = vector.load %arg4[%c0_10, %c0_11] : memref<2x512xf32, #tpu.memory_space<vmem>>, vector<2x512xf32>
    tpu.vector_store %arg4[%c0_10, %c0_11], %20 {strides = array<i32>} : memref<2x512xf32, #tpu.memory_space<vmem>>, vector<2x512xf32>,
    %cst_12 = arith.constant dense<0.000000e+00> : vector<512xf32>
    %22 = vector.multi_reduction <add>, %2, %cst_12 [0] : vector<2x512xf32> to vector<512xf32>
    %23 = vector.shape_cast %22 : vector<512xf32> to vector<1x512xf32>
    %cst_13 = arith.constant dense<0.000000e+00> : vector<512xf32>
    %24 = vector.multi_reduction <add>, %1, %cst_13 [0] : vector<2x512xf32> to vector<512xf32>
    %25 = vector.shape_cast %24 : vector<512xf32> to vector<1x512xf32>
    %26 = arith.mulf %17, %1 : vector<2x512xf32>
    %cst_14 = arith.constant dense<0.000000e+00> : vector<512xf32>
    %27 = vector.multi_reduction <add>, %26, %cst_14 [0] : vector<2x512xf32> to vector<512xf32>
    %28 = vector.shape_cast %27 : vector<512xf32> to vector<1x512xf32>
    %29 = arith.mulf %25, %23 : vector<1x512xf32>
    %cst_15 = arith.constant 2.000000e+00 : f32
    %30 = vector.broadcast %cst_15 : f32 to vector<1x512xf32>
    %31 = arith.subf %30, %25 : vector<1x512xf32>
    %32 = arith.mulf %31, %23 : vector<1x512xf32>
    %33 = arith.mulf %28, %23 : vector<1x512xf32>
    %34 = tpu.concatenate %23, %29, %32, %33 in 0 : vector<1x512xf32>, vector<1x512xf32>, vector<1x512xf32>, vector<1x512xf32> -> vector<4x512xf32>
    %c0_16 = arith.constant 0 : index
    %c0_17 = arith.constant 0 : index
    %35 = vector.load %arg5[%c0_16, %c0_17] : memref<4x512xf32, #tpu.memory_space<vmem>>, vector<4x512xf32>
    tpu.vector_store %arg5[%c0_16, %c0_17], %34 {strides = array<i32>} : memref<4x512xf32, #tpu.memory_space<vmem>>, vector<4x512xf32>,
    %c0_18 = arith.constant 0 : index
    %c0_19 = arith.constant 0 : index
    %36 = vector.load %arg6[%c0_18, %c0_19] : memref<2x512xf32, #tpu.memory_space<vmem>>, vector<2x512xf32>
    tpu.vector_store %arg6[%c0_18, %c0_19], %17 {strides = array<i32>} : memref<2x512xf32, #tpu.memory_space<vmem>>, vector<2x512xf32>,
    return
  }
  func.func @transform_0(%arg0: i32) -> (i32, i32) {
    %c0_i32 = arith.constant 0 : i32
    %c0_i32_0 = arith.constant 0 : i32
    return %c0_i32, %arg0 : i32, i32
  }
  func.func @transform_1(%arg0: i32) -> (i32, i32) {
    %c0_i32 = arith.constant 0 : i32
    %c0_i32_0 = arith.constant 0 : i32
    return %c0_i32, %arg0 : i32, i32
  }
  func.func @transform_2(%arg0: i32) -> (i32, i32) {
    %c0_i32 = arith.constant 0 : i32
    %c0_i32_0 = arith.constant 0 : i32
    return %c0_i32, %arg0 : i32, i32
  }
  func.func @transform_3(%arg0: i32) -> (i32, i32) {
    %c0_i32 = arith.constant 0 : i32
    %c0_i32_0 = arith.constant 0 : i32
    return %c0_i32, %arg0 : i32, i32
  }
  func.func @transform_4(%arg0: i32) -> (i32, i32) {
    %c0_i32 = arith.constant 0 : i32
    %c0_i32_0 = arith.constant 0 : i32
    return %c0_i32, %arg0 : i32, i32
  }
  func.func @transform_5(%arg0: i32) -> (i32, i32) {
    %c0_i32 = arith.constant 0 : i32
    %c0_i32_0 = arith.constant 0 : i32
    return %c0_i32, %arg0 : i32, i32
  }
}

</mosaic_0001>

<llo_original>
// kernel: tpu_custom_call.1
$region0: #{tpu_custom_call.1}
  #allocation0 [shape = 'u32[]', space=smem, size = 0x4, offset = 0x4, fixed_abs, tag = 'smem constant byte address 0x4 - core index']
  #allocation1 [shape = 'u32[144,128]{1,0:T(1,128)}', space=vmem, size = 0x12000, scoped, tag = 'internal scratch']
  %s0 = inlined_call_operand.hbm [shape: f32[2,512], index: 0, kind: input, shape index: {}]
  %s1 = inlined_call_operand.hbm [shape: f32[2,512], index: 1, kind: input, shape index: {}]
  %s2 = inlined_call_operand.hbm [shape: f32[2,512], index: 2, kind: input, shape index: {}]
  %s3 = inlined_call_operand.hbm [shape: f32[2,512], index: 3, kind: output, shape index: {0}]
  %s4 = inlined_call_operand.hbm [shape: f32[4,512], index: 4, kind: output, shape index: {1}]
  %s5 = inlined_call_operand.hbm [shape: f32[2,512], index: 5, kind: output, shape index: {2}]
  %6 = xla_tuple %s3, %s4, %s5
  %s7 = sld [smem:[#allocation0]]
  $region50: #{tpu_custom_call.1} parent=0
    _
  %s9 = ssub.s32 1, %s7
  %s10 = scalar_select 0, %s9, %s7
  $region1: #{tpu_custom_call.1} parent=0
    #allocation2 [shape = 'u8[4096]{0}', space=vmem, size = 0x1000, scoped, tag = 'input window, operand 0, single buffered']
    #allocation3 [shape = 's32[1]{0}', space=sflag, size = 0x4, scoped, tag = 'scoped memory for tpu_custom_call.1']
    #allocation4 [shape = 's32[1]{0}', space=sflag, size = 0x4, scoped, tag = 'scoped memory for tpu_custom_call.1']
    #allocation5 [shape = 'u8[4096]{0}', space=vmem, size = 0x1000, scoped, tag = 'input window, operand 1, single buffered']
    #allocation6 [shape = 's32[1]{0}', space=sflag, size = 0x4, scoped, tag = 'scoped memory for tpu_custom_call.1']
    #allocation7 [shape = 'u8[4096]{0}', space=vmem, size = 0x1000, scoped, tag = 'input window, operand 2, single buffered']
    #allocation8 [shape = 'u8[4096]{0}', space=vmem, size = 0x1000, scoped, tag = 'output window, operand 0, single buffered']
    #allocation9 [shape = 'u8[8192]{0}', space=vmem, size = 0x2000, scoped, tag = 'output window, operand 1, single buffered']
    #allocation10 [shape = 's32[1]{0}', space=sflag, size = 0x4, scoped, tag = 'scoped memory for tpu_custom_call.1']
    #allocation11 [shape = 'u8[4096]{0}', space=vmem, size = 0x1000, scoped, tag = 'output window, operand 2, single buffered']
    %11 = vsyncpa [#allocation3], 0
    %12 = vsyncpa [#allocation6], 0
    %13 = vsyncpa [#allocation4], 0
    %14 = vsyncpa [#allocation10], 0
    // Predicated region
    $region2: #{tpu_custom_call.1} parent=1 // pred_check
      _
    $region3: #{tpu_custom_call.1} parent=1 // pred_check_branch
      %16 = sbr.rel (0) target = $region5
    $region4: #{tpu_custom_call.1} parent=1 // pred_region
      %s18 = ssub.s32 128, 128
      %19 = vsyncadd [#allocation3], %s18
      %s21 = sshll.u32 [#allocation2], 4
      %s22 = int_to_ptr.vmem [resolvable:$true] %s21
      %24 = dma.hbm_to_vmem [thread:$0]  %s0, 128, %s22, [#allocation3]
    $region5: #{tpu_custom_call.1} parent=1 // pred_fallthru
      _
    // Predicated region
    $region6: #{tpu_custom_call.1} parent=1 // pred_check
      _
    $region7: #{tpu_custom_call.1} parent=1 // pred_check_branch
      %26 = sbr.rel (0) target = $region9
    $region8: #{tpu_custom_call.1} parent=1 // pred_region
      %s28 = ssub.s32 128, 128
      %29 = vsyncadd [#allocation6], %s28
      %s31 = sshll.u32 [#allocation5], 4
      %s32 = int_to_ptr.vmem [resolvable:$true] %s31
      %34 = dma.hbm_to_vmem [thread:$0]  %s1, 128, %s32, [#allocation6]
    $region9: #{tpu_custom_call.1} parent=1 // pred_fallthru
      _
    // Predicated region
    $region10: #{tpu_custom_call.1} parent=1 // pred_check
      _
    $region11: #{tpu_custom_call.1} parent=1 // pred_check_branch
      %36 = sbr.rel (0) target = $region13
    $region12: #{tpu_custom_call.1} parent=1 // pred_region
      %s38 = ssub.s32 128, 128
      %39 = vsyncadd [#allocation6], %s38
      %s41 = sshll.u32 [#allocation7], 4
      %s42 = int_to_ptr.vmem [resolvable:$true] %s41
      %44 = dma.hbm_to_vmem [thread:$0]  %s2, 128, %s42, [#allocation6]
    $region13: #{tpu_custom_call.1} parent=1 // pred_fallthru
      _
    // Predicated region
    $region14: #{tpu_custom_call.1} parent=1 // pred_check
      _
    $region15: #{tpu_custom_call.1} parent=1 // pred_check_branch
      %46 = sbr.rel (0) target = $region17
    $region16: #{tpu_custom_call.1} parent=1 // pred_region
      %47 = dma.done [#allocation3], 128
    $region17: #{tpu_custom_call.1} parent=1 // pred_fallthru
      _
    // Predicated region
    $region18: #{tpu_custom_call.1} parent=1 // pred_check
      _
    $region19: #{tpu_custom_call.1} parent=1 // pred_check_branch
      %49 = sbr.rel (0) target = $region21
    $region20: #{tpu_custom_call.1} parent=1 // pred_region
      %50 = dma.done [#allocation6], 128
    $region21: #{tpu_custom_call.1} parent=1 // pred_fallthru
      _
    // Predicated region
    $region22: #{tpu_custom_call.1} parent=1 // pred_check
      _
    $region23: #{tpu_custom_call.1} parent=1 // pred_check_branch
      %52 = sbr.rel (0) target = $region25
    $region24: #{tpu_custom_call.1} parent=1 // pred_region
      %53 = dma.done [#allocation6], 128
    $region25: #{tpu_custom_call.1} parent=1 // pred_fallthru
      _
    %v54 = vld [vmem:[#allocation2] sm:$0xff]
    %v55 = vld [vmem:[#allocation5] sm:$0xff]
    %v56 = vld [vmem:[#allocation7] sm:$0xff]
    %v57 = vlog2.pop %v54
    %v58 = vmul.f32 %v57, 0.6931472
    %v59 = vmax.f32 %v58, -100.0
    %v60 = vsub.f32 1.0, %v54
    %v61 = vlog2.pop %v60
    %v62 = vmul.f32 %v61, 0.6931472
    %v63 = vmax.f32 %v62, -100.0
    %v64 = vmul.f32 %v55, %v59
    %v65 = vsub.f32 1.0, %v55
    %v66 = vmul.f32 %v65, %v63
    %v67 = vadd.f32 %v64, %v66
    %v68 = vsub.f32 0.0, %v67
    %v69 = vmul.f32 %v68, %v65
    %70 = vst [vmem:[#allocation8] sm:$0xff] %v69
    %v72 = vcombine.high %v56, %v56
    %v74 = vunpack.c.l.s4 1983009808
    %v75 = vunpack.c.0.s8 %v74
    %v76 = vlaneseq
    %v77 = vshrl.u32 %v76, 7
    %v78 = vsub.s32 %v75, %v77
    %v79 = vrot.slane %v56, %v78
    %v81 = vunpack.c.l.s4 1983009808
    %v82 = vunpack.c.0.s8 %v81
    %v83 = vlaneseq
    %v84 = vshrl.u32 %v83, 7
    %v85 = vsub.s32 %v82, %v84
    %v86 = vrot.slane %v72, %v85
    %v87 = vcombine.high %v79, %v79
    %v88 = vcombine.high %v86, %v86
    %vm93 = vcmask 1041408
    %v94 = vsel %vm93, %v79, 0.0
    %v95 = vrot.slane %v94, 4
    %v96 = vadd.f32 %v94, %v95
    %v97 = vrot.slane %v96, 2
    %v98 = vadd.f32 %v96, %v97
    %v99 = vrot.slane %v98, 1
    %v100 = vadd.f32 %v98, %v99
    %v101 = vsel %vm93, %v87, 0.0
    %v102 = vrot.slane %v101, 4
    %v103 = vadd.f32 %v101, %v102
    %v104 = vrot.slane %v103, 2
    %v105 = vadd.f32 %v103, %v104
    %v106 = vrot.slane %v105, 1
    %v107 = vadd.f32 %v105, %v106
    %v108 = vsel %vm93, %v86, 0.0
    %v109 = vrot.slane %v108, 4
    %v110 = vadd.f32 %v108, %v109
    %v111 = vrot.slane %v110, 2
    %v112 = vadd.f32 %v110, %v111
    %v113 = vrot.slane %v112, 1
    %v114 = vadd.f32 %v112, %v113
    %v115 = vsel %vm93, %v88, 0.0
    %v116 = vrot.slane %v115, 4
    %v117 = vadd.f32 %v115, %v116
    %v118 = vrot.slane %v117, 2
    %v119 = vadd.f32 %v117, %v118
    %v120 = vrot.slane %v119, 1
    %v121 = vadd.f32 %v119, %v120
    %v123 = vcombine.high %v55, %v55
    %v125 = vunpack.c.l.s4 1983009808
    %v126 = vunpack.c.0.s8 %v125
    %v127 = vlaneseq
    %v128 = vshrl.u32 %v127, 7
    %v129 = vsub.s32 %v126, %v128
    %v130 = vrot.slane %v55, %v129
    %v132 = vunpack.c.l.s4 1983009808
    %v133 = vunpack.c.0.s8 %v132
    %v134 = vlaneseq
    %v135 = vshrl.u32 %v134, 7
    %v136 = vsub.s32 %v133, %v135
    %v137 = vrot.slane %v123, %v136
    %v138 = vcombine.high %v130, %v130
    %v139 = vcombine.high %v137, %v137
    %v144 = vsel %vm93, %v130, 0.0
    %v145 = vrot.slane %v144, 4
    %v146 = vadd.f32 %v144, %v145
    %v147 = vrot.slane %v146, 2
    %v148 = vadd.f32 %v146, %v147
    %v149 = vrot.slane %v148, 1
    %v150 = vadd.f32 %v148, %v149
    %v151 = vsel %vm93, %v138, 0.0
    %v152 = vrot.slane %v151, 4
    %v153 = vadd.f32 %v151, %v152
    %v154 = vrot.slane %v153, 2
    %v155 = vadd.f32 %v153, %v154
    %v156 = vrot.slane %v155, 1
    %v157 = vadd.f32 %v155, %v156
    %v158 = vsel %vm93, %v137, 0.0
    %v159 = vrot.slane %v158, 4
    %v160 = vadd.f32 %v158, %v159
    %v161 = vrot.slane %v160, 2
    %v162 = vadd.f32 %v160, %v161
    %v163 = vrot.slane %v162, 1
    %v164 = vadd.f32 %v162, %v163
    %v165 = vsel %vm93, %v139, 0.0
    %v166 = vrot.slane %v165, 4
    %v167 = vadd.f32 %v165, %v166
    %v168 = vrot.slane %v167, 2
    %v169 = vadd.f32 %v167, %v168
    %v170 = vrot.slane %v169, 1
    %v171 = vadd.f32 %v169, %v170
    %v172 = vmul.f32 %v68, %v55
    %v174 = vcombine.high %v172, %v172
    %v176 = vunpack.c.l.s4 1983009808
    %v177 = vunpack.c.0.s8 %v176
    %v178 = vlaneseq
    %v179 = vshrl.u32 %v178, 7
    %v180 = vsub.s32 %v177, %v179
    %v181 = vrot.slane %v172, %v180
    %v183 = vunpack.c.l.s4 1983009808
    %v184 = vunpack.c.0.s8 %v183
    %v185 = vlaneseq
    %v186 = vshrl.u32 %v185, 7
    %v187 = vsub.s32 %v184, %v186
    %v188 = vrot.slane %v174, %v187
    %v189 = vcombine.high %v181, %v181
    %v190 = vcombine.high %v188, %v188
    %v195 = vsel %vm93, %v181, 0.0
    %v196 = vrot.slane %v195, 4
    %v197 = vadd.f32 %v195, %v196
    %v198 = vrot.slane %v197, 2
    %v199 = vadd.f32 %v197, %v198
    %v200 = vrot.slane %v199, 1
    %v201 = vadd.f32 %v199, %v200
    %v202 = vsel %vm93, %v189, 0.0
    %v203 = vrot.slane %v202, 4
    %v204 = vadd.f32 %v202, %v203
    %v205 = vrot.slane %v204, 2
    %v206 = vadd.f32 %v204, %v205
    %v207 = vrot.slane %v206, 1
    %v208 = vadd.f32 %v206, %v207
    %v209 = vsel %vm93, %v188, 0.0
    %v210 = vrot.slane %v209, 4
    %v211 = vadd.f32 %v209, %v210
    %v212 = vrot.slane %v211, 2
    %v213 = vadd.f32 %v211, %v212
    %v214 = vrot.slane %v213, 1
    %v215 = vadd.f32 %v213, %v214
    %v216 = vsel %vm93, %v190, 0.0
    %v217 = vrot.slane %v216, 4
    %v218 = vadd.f32 %v216, %v217
    %v219 = vrot.slane %v218, 2
    %v220 = vadd.f32 %v218, %v219
    %v221 = vrot.slane %v220, 1
    %v222 = vadd.f32 %v220, %v221
    %v223 = vmul.f32 %v150, %v100
    %v224 = vmul.f32 %v157, %v107
    %v225 = vmul.f32 %v164, %v114
    %v226 = vmul.f32 %v171, %v121
    %v227 = vsub.f32 2.0, %v150
    %v228 = vsub.f32 2.0, %v157
    %v229 = vsub.f32 2.0, %v164
    %v230 = vsub.f32 2.0, %v171
    %v231 = vmul.f32 %v227, %v100
    %v232 = vmul.f32 %v228, %v107
    %v233 = vmul.f32 %v229, %v114
    %v234 = vmul.f32 %v230, %v121
    %v235 = vmul.f32 %v201, %v100
    %v236 = vmul.f32 %v208, %v107
    %v237 = vmul.f32 %v215, %v114
    %v238 = vmul.f32 %v222, %v121
    %vm239 = vcmask 1040384
    %v240 = vsel %vm239, %v100, %v223
    %v241 = vsel %vm239, %v107, %v224
    %v242 = vsel %vm239, %v114, %v225
    %v243 = vsel %vm239, %v121, %v226
    %v244 = vsel %vm93, %v240, %v231
    %v245 = vsel %vm93, %v241, %v232
    %v246 = vsel %vm93, %v242, %v233
    %v247 = vsel %vm93, %v243, %v234
    %vm248 = vcmask 1042432
    %v249 = vsel %vm248, %v244, %v235
    %v250 = vsel %vm248, %v245, %v236
    %v251 = vsel %vm248, %v246, %v237
    %v252 = vsel %vm248, %v247, %v238
    %v257 = vcombine.low %v249, %v250
    %v258 = vcombine.low %v251, %v252
    %261 = vst [vmem:[#allocation9] sm:$0xff] %v257
    %262 = vst [vmem:[#allocation9 + $0x8] sm:$0xff] %v258
    %263 = vst [vmem:[#allocation11] sm:$0xff] %v68
    // Predicated region
    $region26: #{tpu_custom_call.1} parent=1 // pred_check
      _
    $region27: #{tpu_custom_call.1} parent=1 // pred_check_branch
      %265 = sbr.rel (0) target = $region29
    $region28: #{tpu_custom_call.1} parent=1 // pred_region
      %s267 = ssub.s32 128, 128
      %268 = vsyncadd [#allocation4], %s267
      %s270 = sshll.u32 [#allocation8], 4
      %s271 = int_to_ptr.vmem [resolvable:$true] %s270
      %273 = dma.vmem_to_hbm [thread:$0]  %s271, 128, %s3, [#allocation4]
    $region29: #{tpu_custom_call.1} parent=1 // pred_fallthru
      _
    // Predicated region
    $region30: #{tpu_custom_call.1} parent=1 // pred_check
      _
    $region31: #{tpu_custom_call.1} parent=1 // pred_check_branch
      %275 = sbr.rel (0) target = $region33
    $region32: #{tpu_custom_call.1} parent=1 // pred_region
      %s277 = ssub.s32 256, 256
      %278 = vsyncadd [#allocation10], %s277
      %s280 = sshll.u32 [#allocation9], 4
      %s281 = int_to_ptr.vmem [resolvable:$true] %s280
      %283 = dma.vmem_to_hbm [thread:$0]  %s281, 256, %s4, [#allocation10]
    $region33: #{tpu_custom_call.1} parent=1 // pred_fallthru
      _
    // Predicated region
    $region34: #{tpu_custom_call.1} parent=1 // pred_check
      _
    $region35: #{tpu_custom_call.1} parent=1 // pred_check_branch
      %285 = sbr.rel (0) target = $region37
    $region36: #{tpu_custom_call.1} parent=1 // pred_region
      %s287 = ssub.s32 128, 128
      %288 = vsyncadd [#allocation10], %s287
      %s290 = sshll.u32 [#allocation11], 4
      %s291 = int_to_ptr.vmem [resolvable:$true] %s290
      %293 = dma.vmem_to_hbm [thread:$0]  %s291, 128, %s5, [#allocation10]
    $region37: #{tpu_custom_call.1} parent=1 // pred_fallthru
      _
    // Predicated region
    $region38: #{tpu_custom_call.1} parent=1 // pred_check
      _
    $region39: #{tpu_custom_call.1} parent=1 // pred_check_branch
      %295 = sbr.rel (0) target = $region41
    $region40: #{tpu_custom_call.1} parent=1 // pred_region
      %296 = dma.done [#allocation4], 128
    $region41: #{tpu_custom_call.1} parent=1 // pred_fallthru
      _
    // Predicated region
    $region42: #{tpu_custom_call.1} parent=1 // pred_check
      _
    $region43: #{tpu_custom_call.1} parent=1 // pred_check_branch
      %298 = sbr.rel (0) target = $region45
    $region44: #{tpu_custom_call.1} parent=1 // pred_region
      %299 = dma.done [#allocation10], 256
    $region45: #{tpu_custom_call.1} parent=1 // pred_fallthru
      _
    // Predicated region
    $region46: #{tpu_custom_call.1} parent=1 // pred_check
      _
    $region47: #{tpu_custom_call.1} parent=1 // pred_check_branch
      %301 = sbr.rel (0) target = $region49
    $region48: #{tpu_custom_call.1} parent=1 // pred_region
      %302 = dma.done [#allocation10], 128
    $region49: #{tpu_custom_call.1} parent=1 // pred_fallthru
      _
    %303 = vsyncpa [#allocation3], 1
    %304 = vsyncpa [#allocation6], 1
    %305 = vsyncpa [#allocation4], 1
    %306 = vsyncpa [#allocation10], 1

</llo_original>
